<compile_context>
chip_gen: v5e
topology: v5e:2x2
jax: 0.10.0
libtpu: 0.0.40
codegen_flags: <defaults>
</compile_context>

<pallas_src>
import functools

import jax
import jax.numpy as jnp
from jax.experimental import pallas as pl
from jax.experimental.pallas import tpu as pltpu


# ----------------------------- Pallas kernel ------------------------------ #
def widedeep_kernel(xT_ref, w1_ref, b1_ref, w2_ref, b2_ref,
                    wf_ref, ww_ref, bc_ref, out_ref, *, n_dense):
    """One batch tile, feature-major layout (batch on lanes).

    xT_ref : [D_in, TB]  concat(sparse_embeds, dense), transposed  (bf16)
    w1/b1  : [H1, D_in], [H1, 1]   Dnn layer 1 (PyTorch Linear layout)
    w2/b2  : [H2, H1],   [H2, 1]   Dnn layer 2
    wf     : [H2, 1]               0.5 * final_linear weight (column, f32)
    ww     : [n_dense, 1]          0.5 * wide weight (column, f32)
    bc     : [1, 1] in SMEM        0.5 * (final_bias + wide_bias)
    out    : [1, TB]               sigmoid(0.5 * (wide + deep)), lane-dense
    """
    xT = xT_ref[...]                                             # (D_in, TB)

    # ---- Deep part (Dnn): Linear -> ReLU, Linear -> ReLU (dropout p=0.0) ---
    h1 = jnp.dot(w1_ref[...], xT, preferred_element_type=jnp.float32)
    h1 = jnp.maximum(h1 + b1_ref[...], 0.0)                      # (H1, TB) f32
    h2 = jnp.dot(w2_ref[...], h1.astype(w2_ref.dtype),
                 preferred_element_type=jnp.float32)
    h2 = jnp.maximum(h2 + b2_ref[...], 0.0)                      # (H2, TB) f32
    # TODO(synk): on v6e/v7x the bias+ReLU could run in bf16 if VALU-bound.

    # ---- Final linear: VPU multiply + sublane (XLU) reduce over H2 ----
    deep = jnp.sum(h2 * wf_ref[...], axis=0, keepdims=True)      # (1, TB)

    # ---- Wide linear: only the n_dense trailing rows of xT participate ----
    d_in = xT_ref.shape[0]
    dense_rows = xT_ref[pl.ds(d_in - n_dense, n_dense), :].astype(jnp.float32)
    wide = jnp.sum(dense_rows * ww_ref[...], axis=0, keepdims=True)  # (1, TB)

    # z = 0.5*(wide_raw + deep_raw)  (0.5 and both scalar biases pre-folded).
    z = deep + wide + bc_ref[0, 0]
    # Approx EUP reciprocal: ~1e-3 relative error, fine for probabilities.
    out_ref[...] = pl.reciprocal(1.0 + jnp.exp(-z), approx=True)


# ------------------------------ Tiling helper ------------------------------ #
def _pick_tile(batch, block_b):
    """Effective batch tile: multiple of 256 (fills the 2x256 MXU on v6e/v7x,
    lane-dense output stores), capped by the requested block_b, and split into
    >= 2 grid steps whenever the padded batch allows it (v7x megacore)."""
    unit = 256
    b_ceil = unit * pl.cdiv(batch, unit)
    tb = max(unit, unit * (min(block_b, b_ceil) // unit))
    if b_ceil // tb < 2 and b_ceil >= 2 * unit:
        tb = unit * max(1, (b_ceil // 2) // unit)
    b_pad = tb * pl.cdiv(batch, tb)
    return tb, b_pad


# ------------------------------ Pallas wrapper ----------------------------- #
def widedeep_pallas(xT, folded_params, *, n_dense, tb, xt_buffers=2):
    """xT: bf16 [D_in, B_pad] feature-major activations, B_pad a multiple of
    the tile width tb.  Returns [B_pad] probabilities (f32)."""
    w1, b1, w2, b2, wf_half, ww_half, bc = folded_params
    d_in, b_pad = xT.shape
    assert b_pad % tb == 0 and tb % 128 == 0, (b_pad, tb)

    kernel = functools.partial(widedeep_kernel, n_dense=n_dense)

    consts = (w1, b1, w2, b2, wf_half, ww_half)

    def const_spec(a):      # whole weight, VMEM-resident across the grid
        nd = a.ndim
        return pl.BlockSpec(a.shape, lambda i, _nd=nd: (0,) * _nd)

    if xt_buffers == 2:
        xt_spec = pl.BlockSpec((d_in, tb), lambda i: (0, i))
    else:
        # v5e: pass xt_buffers=3 if xprof shows exposed xT DMA.
        xt_spec = pl.BlockSpec((d_in, tb), lambda i: (0, i),
                               pipeline_mode=pl.Buffered(xt_buffers))

    out = pl.pallas_call(
        kernel,
        out_shape=jax.ShapeDtypeStruct((1, b_pad), jnp.float32),
        grid=(b_pad // tb,),
        in_specs=[xt_spec]
                 + [const_spec(a) for a in consts]
                 + [pl.BlockSpec(memory_space=pltpu.MemorySpace.SMEM)],
        out_specs=pl.BlockSpec((1, tb), lambda i: (0, i)),
        compiler_params=pltpu.CompilerParams(
            dimension_semantics=("parallel",)),
    )(xT, *consts, bc)

    return out.reshape(b_pad)


# --------------------------- Model construction ---------------------------- #
def make_params(key, n_dense, n_sparse, feat_num, embed_dim, hidden_units):
    """Deterministic synthetic parameters in PyTorch Linear layout (f32)."""
    keys = jax.random.split(key, 2 * n_sparse + 16)
    k = iter(keys)

    embed_tables = [
        0.1 * jax.random.normal(next(k), (feat_num, embed_dim), jnp.float32)
        for _ in range(n_sparse)
    ]

    d_in = n_dense + n_sparse * embed_dim
    dims = [d_in] + list(hidden_units)          # e.g. [28, 32, 16]

    def linear(kw, kb, fan_in, fan_out):
        w = (1.0 / jnp.sqrt(fan_in)) * jax.random.normal(
            kw, (fan_out, fan_in), jnp.float32)            # PyTorch (out, in)
        b = 0.01 * jax.random.normal(kb, (fan_out,), jnp.float32)
        return w, b

    w1, b1 = linear(next(k), next(k), dims[0], dims[1])    # Dnn layer 1
    w2, b2 = linear(next(k), next(k), dims[1], dims[2])    # Dnn layer 2
    wf, bf = linear(next(k), next(k), dims[2], 1)          # final_linear
    ww, bw = linear(next(k), next(k), n_dense, 1)          # wide Linear
    return embed_tables, (w1, b1, w2, b2, wf, bf, ww, bw)


def prepare_embed_tables(embed_tables, compute_dtype=jnp.bfloat16):
    """Pre-transpose (V,E)->(E,V) and cast once so each per-batch gather lands
    feature-major in the compute dtype with no batch-sized transpose/cast."""
    return [t.T.astype(compute_dtype) for t in embed_tables]


def fold_params(raw_params, compute_dtype=jnp.bfloat16):
    """Fold the 0.5 factor + both scalar biases; cast MXU weights once."""
    w1, b1, w2, b2, wf, bf, ww, bw = raw_params
    wf_half = (0.5 * wf.reshape(-1, 1)).astype(jnp.float32)        # (H2, 1)
    ww_half = (0.5 * ww.reshape(-1, 1)).astype(jnp.float32)        # (n_dense, 1)
    bc = (0.5 * (bf.reshape(()) + bw.reshape(()))).reshape(1, 1)
    return (w1.astype(compute_dtype), b1.reshape(-1, 1).astype(jnp.float32),
            w2.astype(compute_dtype), b2.reshape(-1, 1).astype(jnp.float32),
            wf_half, ww_half, bc.astype(jnp.float32))


# ------------------------------- Forward pass ------------------------------ #
def widedeep_forward(dense_x, sparse_idx, embed_tablesT, folded_params, *,
                     block_b=2048, xt_buffers=2, compute_dtype=jnp.bfloat16):
    """Embedding gather + concat in JAX (feature-major, bf16, pad folded in);
    the rest runs in the Pallas kernel."""
    batch, n_dense = dense_x.shape
    tb, b_pad = _pick_tile(batch, block_b)
    pad = b_pad - batch
    if pad:
        # Padded lanes get index-0 embedding rows / zero dense rows -> finite,
        # and are sliced off after the kernel (never rely on OOB blocks).
        sparse_idx = jnp.pad(sparse_idx, ((0, pad), (0, 0)))
        dense_x = jnp.pad(dense_x, ((0, pad), (0, 0)))
    # TODO(synk): for large vocab / embed_dim, fuse the gather into the Pallas
    # path via PrefetchScalarGridSpec; at embed_dim=8 each row is ~16 B and a
    # per-row DMA would be slower than the XLA gather.
    cols = [jnp.take(embed_tablesT[i], sparse_idx[:, i], axis=1)   # (E, B_pad)
            for i in range(sparse_idx.shape[1])]
    cols.append(dense_x.T.astype(compute_dtype))                   # (n_dense, B_pad)
    xT = jnp.concatenate(cols, axis=0)        # single bf16 [D_in, B_pad] slab
    # NOTE: the wide branch consumes the bf16 dense rows (within tolerance);
    # pass dense rows as a separate f32 input if tighter accuracy is needed.
    out = widedeep_pallas(xT, folded_params, n_dense=n_dense, tb=tb,
                          xt_buffers=xt_buffers)
    return out[:batch]


def widedeep_reference(dense_x, sparse_idx, embed_tables, raw_params):
    """Pure-JAX f32 reference (mirrors the PyTorch forward)."""
    w1, b1, w2, b2, wf, bf, ww, bw = raw_params
    embeds = jnp.concatenate(
        [jnp.take(embed_tables[i], sparse_idx[:, i], axis=0)
         for i in range(sparse_idx.shape[1])], axis=-1)
    dnn_in = jnp.concatenate([embeds, dense_x], axis=-1)     # (B, D_in)
    h1 = jnp.maximum(dnn_in @ w1.T + b1, 0.0)
    h2 = jnp.maximum(h1 @ w2.T + b2, 0.0)                    # Dnn (dropout p=0)
    deep = h2 @ wf.T + bf
    wide = dense_x @ ww.T + bw
    return jax.nn.sigmoid(0.5 * (wide + deep)).reshape(-1)


# --------------------------------- main ------------------------------------ #
if __name__ == "__main__":
    B = 8
    n_dense = 4
    n_sparse = 3
    feat_num = 10
    embed_dim = 8
    hidden_units = [32, 16]

    key = jax.random.PRNGKey(0)
    k_param, k_dense, k_sparse = jax.random.split(key, 3)

    embed_tables, raw_params = make_params(
        k_param, n_dense, n_sparse, feat_num, embed_dim, hidden_units)
    embed_tablesT = prepare_embed_tables(embed_tables)
    folded_params = fold_params(raw_params)

    dense_x = jax.random.normal(k_dense, (B, n_dense), jnp.float32)
    sparse_idx = jax.random.randint(
        k_sparse, (B, n_sparse), 0, feat_num, dtype=jnp.int32)

    out = widedeep_forward(dense_x, sparse_idx, embed_tablesT, folded_params,
                           block_b=2048)
    out = jax.block_until_ready(out)

    ref = jax.block_until_ready(
        widedeep_reference(dense_x, sparse_idx, embed_tables, raw_params))

    assert out.shape == (B,)
    assert bool(jnp.all(jnp.isfinite(out)))
    max_err = float(jnp.max(jnp.abs(out - ref)))
    assert max_err < 5e-2, f"max abs err vs reference: {max_err}"
    print("KERNEL_OK")
</pallas_src>

<mosaic_0001>
module attributes {stable_mosaic.version = 11 : i64} {
  func.func @widedeep_kernel(%arg0: i32, %arg1: memref<28x256xbf16, #tpu.memory_space<vmem>>, %arg2: memref<32x28xbf16, #tpu.memory_space<vmem>>, %arg3: memref<32x1xf32, #tpu.memory_space<vmem>>, %arg4: memref<16x32xbf16, #tpu.memory_space<vmem>>, %arg5: memref<16x1xf32, #tpu.memory_space<vmem>>, %arg6: memref<16x1xf32, #tpu.memory_space<vmem>>, %arg7: memref<4x1xf32, #tpu.memory_space<vmem>>, %arg8: memref<1x1xf32, #tpu.memory_space<smem>>, %arg9: memref<1x256xf32, #tpu.memory_space<vmem>>) attributes {dimension_semantics = [#tpu.dimension_semantics<parallel>], iteration_bounds = array<i64: 1>, scalar_prefetch = 0 : i64, scratch_operands = 0 : i64, tpu.core_type = #tpu.core_type<tc>, window_params = [{transform_indices = @transform_0, window_bounds = array<i64: 28, 256>}, {pipeline_mode = #tpu.pipeline_mode<synchronous>, transform_indices = @transform_1, window_bounds = array<i64: 32, 28>}, {pipeline_mode = #tpu.pipeline_mode<synchronous>, transform_indices = @transform_2, window_bounds = array<i64: 32, 1>}, {pipeline_mode = #tpu.pipeline_mode<synchronous>, transform_indices = @transform_3, window_bounds = array<i64: 16, 32>}, {pipeline_mode = #tpu.pipeline_mode<synchronous>, transform_indices = @transform_4, window_bounds = array<i64: 16, 1>}, {pipeline_mode = #tpu.pipeline_mode<synchronous>, transform_indices = @transform_5, window_bounds = array<i64: 16, 1>}, {pipeline_mode = #tpu.pipeline_mode<synchronous>, transform_indices = @transform_6, window_bounds = array<i64: 4, 1>}, {transform_indices = @transform_7, window_bounds = array<i64: 1, 1>}, {transform_indices = @transform_8, window_bounds = array<i64: 1, 256>}]} {
    %c0 = arith.constant 0 : index
    %c0_0 = arith.constant 0 : index
    %0 = vector.load %arg1[%c0, %c0_0] : memref<28x256xbf16, #tpu.memory_space<vmem>>, vector<28x256xbf16>
    %c0_1 = arith.constant 0 : index
    %c0_2 = arith.constant 0 : index
    %1 = vector.load %arg2[%c0_1, %c0_2] : memref<32x28xbf16, #tpu.memory_space<vmem>>, vector<32x28xbf16>
    %cst = arith.constant dense<0.000000e+00> : vector<32x256xf32>
    %2 = tpu.matmul %1, %0, %cst {dimension_numbers = #tpu.dot_dimension_numbers<[1], [0], [0], [1], [0, 0, 1, 1], [], []>} : vector<32x28xbf16>, vector<28x256xbf16>, vector<32x256xf32> -> vector<32x256xf32>
    %c0_3 = arith.constant 0 : index
    %c0_4 = arith.constant 0 : index
    %3 = vector.load %arg3[%c0_3, %c0_4] : memref<32x1xf32, #tpu.memory_space<vmem>>, vector<32x1xf32>
    %4 = vector.broadcast %3 : vector<32x1xf32> to vector<32x256xf32>
    %5 = arith.addf %2, %4 : vector<32x256xf32>
    %cst_5 = arith.constant 0.000000e+00 : f32
    %6 = vector.broadcast %cst_5 : f32 to vector<32x256xf32>
    %7 = arith.maximumf %5, %6 : vector<32x256xf32>
    %c0_6 = arith.constant 0 : index
    %c0_7 = arith.constant 0 : index
    %8 = vector.load %arg4[%c0_6, %c0_7] : memref<16x32xbf16, #tpu.memory_space<vmem>>, vector<16x32xbf16>
    %9 = arith.truncf %7 : vector<32x256xf32> to vector<32x256xbf16>
    %cst_8 = arith.constant dense<0.000000e+00> : vector<16x256xf32>
    %10 = tpu.matmul %8, %9, %cst_8 {dimension_numbers = #tpu.dot_dimension_numbers<[1], [0], [0], [1], [0, 0, 1, 1], [], []>} : vector<16x32xbf16>, vector<32x256xbf16>, vector<16x256xf32> -> vector<16x256xf32>
    %c0_9 = arith.constant 0 : index
    %c0_10 = arith.constant 0 : index
    %11 = vector.load %arg5[%c0_9, %c0_10] : memref<16x1xf32, #tpu.memory_space<vmem>>, vector<16x1xf32>
    %12 = vector.broadcast %11 : vector<16x1xf32> to vector<16x256xf32>
    %13 = arith.addf %10, %12 : vector<16x256xf32>
    %cst_11 = arith.constant 0.000000e+00 : f32
    %14 = vector.broadcast %cst_11 : f32 to vector<16x256xf32>
    %15 = arith.maximumf %13, %14 : vector<16x256xf32>
    %c0_12 = arith.constant 0 : index
    %c0_13 = arith.constant 0 : index
    %16 = vector.load %arg6[%c0_12, %c0_13] : memref<16x1xf32, #tpu.memory_space<vmem>>, vector<16x1xf32>
    %17 = vector.broadcast %16 : vector<16x1xf32> to vector<16x256xf32>
    %18 = arith.mulf %15, %17 : vector<16x256xf32>
    %cst_14 = arith.constant dense<0.000000e+00> : vector<256xf32>
    %19 = vector.multi_reduction <add>, %18, %cst_14 [0] : vector<16x256xf32> to vector<256xf32>
    %20 = vector.shape_cast %19 : vector<256xf32> to vector<1x256xf32>
    %c24 = arith.constant 24 : index
    %c0_15 = arith.constant 0 : index
    %21 = vector.load %arg1[%c24, %c0_15] : memref<28x256xbf16, #tpu.memory_space<vmem>>, vector<4x256xbf16>
    %22 = arith.extf %21 : vector<4x256xbf16> to vector<4x256xf32>
    %c0_16 = arith.constant 0 : index
    %c0_17 = arith.constant 0 : index
    %23 = vector.load %arg7[%c0_16, %c0_17] : memref<4x1xf32, #tpu.memory_space<vmem>>, vector<4x1xf32>
    %24 = vector.broadcast %23 : vector<4x1xf32> to vector<4x256xf32>
    %25 = arith.mulf %22, %24 : vector<4x256xf32>
    %cst_18 = arith.constant dense<0.000000e+00> : vector<256xf32>
    %26 = vector.multi_reduction <add>, %25, %cst_18 [0] : vector<4x256xf32> to vector<256xf32>
    %27 = vector.shape_cast %26 : vector<256xf32> to vector<1x256xf32>
    %28 = arith.addf %20, %27 : vector<1x256xf32>
    %c0_19 = arith.constant 0 : index
    %c0_20 = arith.constant 0 : index
    %29 = memref.load %arg8[%c0_19, %c0_20] : memref<1x1xf32, #tpu.memory_space<smem>>
    %30 = vector.broadcast %29 : f32 to vector<1x256xf32>
    %31 = arith.addf %28, %30 : vector<1x256xf32>
    %cst_21 = arith.constant 0.000000e+00 : f32
    %32 = vector.broadcast %cst_21 : f32 to vector<1x256xf32>
    %33 = arith.subf %32, %31 : vector<1x256xf32>
    %34 = math.exp %33 : vector<1x256xf32>
    %cst_22 = arith.constant 1.000000e+00 : f32
    %35 = vector.broadcast %cst_22 : f32 to vector<1x256xf32>
    %36 = arith.addf %35, %34 : vector<1x256xf32>
    %37 = tpu.reciprocal %36 {approx = true} : vector<1x256xf32> -> vector<1x256xf32>
    %c0_23 = arith.constant 0 : index
    %c0_24 = arith.constant 0 : index
    %38 = vector.load %arg9[%c0_23, %c0_24] : memref<1x256xf32, #tpu.memory_space<vmem>>, vector<1x256xf32>
    tpu.vector_store %arg9[%c0_23, %c0_24], %37 {strides = array<i32>} : memref<1x256xf32, #tpu.memory_space<vmem>>, vector<1x256xf32>,
    return
  }
  func.func @transform_0(%arg0: i32) -> (i32, i32) {
    %c0_i32 = arith.constant 0 : i32
    %c0_i32_0 = arith.constant 0 : i32
    return %c0_i32, %arg0 : i32, i32
  }
  func.func @transform_1(%arg0: i32) -> (i32, i32) {
    %c0_i32 = arith.constant 0 : i32
    %c0_i32_0 = arith.constant 0 : i32
    %c0_i32_1 = arith.constant 0 : i32
    return %c0_i32, %c0_i32_0 : i32, i32
  }
  func.func @transform_2(%arg0: i32) -> (i32, i32) {
    %c0_i32 = arith.constant 0 : i32
    %c0_i32_0 = arith.constant 0 : i32
    %c0_i32_1 = arith.constant 0 : i32
    return %c0_i32, %c0_i32_0 : i32, i32
  }
  func.func @transform_3(%arg0: i32) -> (i32, i32) {
    %c0_i32 = arith.constant 0 : i32
    %c0_i32_0 = arith.constant 0 : i32
    %c0_i32_1 = arith.constant 0 : i32
    return %c0_i32, %c0_i32_0 : i32, i32
  }
  func.func @transform_4(%arg0: i32) -> (i32, i32) {
    %c0_i32 = arith.constant 0 : i32
    %c0_i32_0 = arith.constant 0 : i32
    %c0_i32_1 = arith.constant 0 : i32
    return %c0_i32, %c0_i32_0 : i32, i32
  }
  func.func @transform_5(%arg0: i32) -> (i32, i32) {
    %c0_i32 = arith.constant 0 : i32
    %c0_i32_0 = arith.constant 0 : i32
    %c0_i32_1 = arith.constant 0 : i32
    return %c0_i32, %c0_i32_0 : i32, i32
  }
  func.func @transform_6(%arg0: i32) -> (i32, i32) {
    %c0_i32 = arith.constant 0 : i32
    %c0_i32_0 = arith.constant 0 : i32
    %c0_i32_1 = arith.constant 0 : i32
    return %c0_i32, %c0_i32_0 : i32, i32
  }
  func.func @transform_7(%arg0: i32) -> (i32, i32) {
    %c0_i32 = arith.constant 0 : i32
    %c0_i32_0 = arith.constant 0 : i32
    %c0_i32_1 = arith.constant 0 : i32
    return %c0_i32, %c0_i32_0 : i32, i32
  }
  func.func @transform_8(%arg0: i32) -> (i32, i32) {
    %c0_i32 = arith.constant 0 : i32
    %c0_i32_0 = arith.constant 0 : i32
    return %c0_i32, %arg0 : i32, i32
  }
}

</mosaic_0001>

<llo_original>
// kernel: tpu_custom_call.1
$region0: #{tpu_custom_call.1}
  #allocation0 [shape = 'u32[]', space=smem, size = 0x4, offset = 0x4, fixed_abs, tag = 'smem constant byte address 0x4 - core index']
  #allocation1 [shape = 'u32[72,128]{1,0:T(1,128)}', space=vmem, size = 0x9000, scoped, tag = 'internal scratch']
  #allocation2 [shape = 'f32[1,1]{1,0:T(1,128)S(6)}', space=smem, size = 0x200, scoped, tag = 'scoped memory for tpu_custom_call.1']
  %s0 = inlined_call_operand.vmem [shape: bf16[28,256], index: 0, kind: input, shape index: {}]
  %s1 = inlined_call_operand.vmem [shape: bf16[32,28], index: 1, kind: input, shape index: {}]
  %s2 = inlined_call_operand.vmem [shape: f32[32,1], index: 2, kind: input, shape index: {}]
  %s3 = inlined_call_operand.vmem [shape: bf16[16,32], index: 3, kind: input, shape index: {}]
  %s4 = inlined_call_operand.vmem [shape: f32[16,1], index: 4, kind: input, shape index: {}]
  %s5 = inlined_call_operand.vmem [shape: f32[16,1], index: 5, kind: input, shape index: {}]
  %s6 = inlined_call_operand.vmem [shape: f32[4,1], index: 6, kind: input, shape index: {}]
  %s7 = inlined_call_operand.<no memory space> [shape: f32[1,1], index: 7, kind: input, shape index: {}]
  %s8 = inlined_call_operand.hbm [shape: f32[1,256], index: 8, kind: output, shape index: {}]
  %s9 = sld [smem:[#allocation0]]
  $region42: #{tpu_custom_call.1} parent=0
    _
  %s11 = ssub.s32 1, %s9
  %s12 = scalar_select 0, %s11, %s9
  %13 = sst [smem:[#allocation2]] %s7
  $region1: #{tpu_custom_call.1} parent=0
    #allocation3 [shape = 'u8[1024]{0}', space=vmem, size = 0x400, scoped, tag = 'output window, operand 0, single buffered']
    #allocation4 [shape = 's32[1]{0}', space=sflag, size = 0x4, scoped, tag = 'scoped memory for tpu_custom_call.1']
    %14 = vsyncpa [#allocation4], 0
    // Predicated region
    $region2: #{tpu_custom_call.1} parent=1 // pred_check
      _
    $region3: #{tpu_custom_call.1} parent=1 // pred_check_branch
      %16 = sbr.rel (0) target = $region5
    $region4: #{tpu_custom_call.1} parent=1 // pred_region
      _
    $region5: #{tpu_custom_call.1} parent=1 // pred_fallthru
      _
    // Predicated region
    $region6: #{tpu_custom_call.1} parent=1 // pred_check
      _
    $region7: #{tpu_custom_call.1} parent=1 // pred_check_branch
      %18 = sbr.rel (0) target = $region9
    $region8: #{tpu_custom_call.1} parent=1 // pred_region
      _
    $region9: #{tpu_custom_call.1} parent=1 // pred_fallthru
      _
    // Predicated region
    $region10: #{tpu_custom_call.1} parent=1 // pred_check
      _
    $region11: #{tpu_custom_call.1} parent=1 // pred_check_branch
      %20 = sbr.rel (0) target = $region13
    $region12: #{tpu_custom_call.1} parent=1 // pred_region
      _
    $region13: #{tpu_custom_call.1} parent=1 // pred_fallthru
      _
    // Predicated region
    $region14: #{tpu_custom_call.1} parent=1 // pred_check
      _
    $region15: #{tpu_custom_call.1} parent=1 // pred_check_branch
      %22 = sbr.rel (0) target = $region17
    $region16: #{tpu_custom_call.1} parent=1 // pred_region
      _
    $region17: #{tpu_custom_call.1} parent=1 // pred_fallthru
      _
    // Predicated region
    $region18: #{tpu_custom_call.1} parent=1 // pred_check
      _
    $region19: #{tpu_custom_call.1} parent=1 // pred_check_branch
      %24 = sbr.rel (0) target = $region21
    $region20: #{tpu_custom_call.1} parent=1 // pred_region
      _
    $region21: #{tpu_custom_call.1} parent=1 // pred_fallthru
      _
    // Predicated region
    $region22: #{tpu_custom_call.1} parent=1 // pred_check
      _
    $region23: #{tpu_custom_call.1} parent=1 // pred_check_branch
      %26 = sbr.rel (0) target = $region25
    $region24: #{tpu_custom_call.1} parent=1 // pred_region
      _
    $region25: #{tpu_custom_call.1} parent=1 // pred_fallthru
      _
    // Predicated region
    $region26: #{tpu_custom_call.1} parent=1 // pred_check
      _
    $region27: #{tpu_custom_call.1} parent=1 // pred_check_branch
      %28 = sbr.rel (0) target = $region29
    $region28: #{tpu_custom_call.1} parent=1 // pred_region
      _
    $region29: #{tpu_custom_call.1} parent=1 // pred_fallthru
      _
    // Predicated region
    $region30: #{tpu_custom_call.1} parent=1 // pred_check
      _
    $region31: #{tpu_custom_call.1} parent=1 // pred_check_branch
      %30 = sbr.rel (0) target = $region33
    $region32: #{tpu_custom_call.1} parent=1 // pred_region
      _
    $region33: #{tpu_custom_call.1} parent=1 // pred_fallthru
      _
    %v32 = vld [vmem:[%s0] sm:$0xff]
    %v33 = vld [vmem:[%s0 + $0x8] sm:$0xff]
    %v34 = vld [vmem:[%s0 + $0x10] sm:$0xff]
    %v35 = vld [vmem:[%s0 + $0x18] sm:$0x33]
    %v36 = vld [vmem:[%s1] sm:$0xf]
    %v37 = vld [vmem:[%s1 + $0x4] sm:$0xf]
    %v38 = vld [vmem:[%s1 + $0x8] sm:$0xf]
    %v39 = vld [vmem:[%s1 + $0xc] sm:$0xf]
    %v40 = vld [vmem:[%s2] sm:$0xff]
    %v41 = vld [vmem:[%s2 + $0x8] sm:$0xff]
    %v42 = vld [vmem:[%s2 + $0x10] sm:$0xff]
    %v43 = vld [vmem:[%s2 + $0x18] sm:$0xff]
    %45 = vset.pattern.permute.xlu0 0
    %46 = vperm.xlu0 %45, %v40
    %v47 = vpop.permute.xlu0 %46
    %50 = vset.pattern.permute.xlu0 0
    %51 = vperm.xlu0 %50, %v41
    %v52 = vpop.permute.xlu0 %51
    %55 = vset.pattern.permute.xlu0 0
    %56 = vperm.xlu0 %55, %v42
    %v57 = vpop.permute.xlu0 %56
    %60 = vset.pattern.permute.xlu0 0
    %61 = vperm.xlu0 %60, %v43
    %v62 = vpop.permute.xlu0 %61
    %v68 = vunpack.c.l.b16 %v36
    %v69 = vunpack.c.l.b16 %v37
    %v70 = vunpack.c.l.b16 %v38
    %v71 = vunpack.c.l.b16 %v39
    %v72 = vpack.c.b16 %v69, %v68
    %v73 = vpack.c.b16 %v71, %v70
    %v78 = vunpack.c.l.b16 %v32
    %v79 = vunpack.c.h.b16 %v32
    %v80 = vunpack.c.l.b16 %v33
    %v81 = vunpack.c.h.b16 %v33
    %v82 = vunpack.c.l.b16 %v34
    %v83 = vunpack.c.h.b16 %v34
    %v84 = vunpack.c.l.b16 %v35
    %v85 = vunpack.c.h.b16 %v35
    %v86 = vpack.c.b16 %v80, %v78
    %v87 = vpack.c.b16 %v81, %v79
    %v88 = vpack.c.b16 %v84, %v82
    %v89 = vpack.c.b16 %v85, %v83
    %vm92 = vcmask 228352
    %v94 = vsel %vm92, %v72, 0
    %v97 = vsel %vm92, %v73, 0
    %vm99 = vcmask 1045504
    %v101 = vsel %vm99, %v88, 0
    %v104 = vsel %vm99, %v89, 0
    %106 = vmatpush.bf16.msra.mxu0 0
    %107 = vmatpush.bf16.msra.mxu0 0
    %108 = vmatpush.bf16.msra.mxu0 0
    %109 = vmatpush.bf16.msra.mxu0 0
    %110 = vmatpush.bf16.msra.mxu0 0
    %111 = vmatpush.bf16.msra.mxu0 0
    %112 = vmatpush.bf16.msra.mxu0 %v101
    %113 = vmatpush.bf16.msra.mxu0 %v86
    %114 = vmatmul.bf16.gmra.mxu0 %v94
    %v115 = vpop.f32.mrf.mxu0
    %v116 = vadd.f32 %v47, %v115
    %v117 = vpop.f32.mrf.mxu0
    %v118 = vadd.f32 %v52, %v117
    %119 = vmatmul.bf16.gmra.mxu0 %v97
    %v120 = vpop.f32.mrf.mxu0
    %v121 = vadd.f32 %v57, %v120
    %v122 = vpop.f32.mrf.mxu0
    %v123 = vadd.f32 %v62, %v122
    %124 = vdwg.mxu0
    %125 = vmatpush.bf16.msra.mxu0 0
    %126 = vmatpush.bf16.msra.mxu0 0
    %127 = vmatpush.bf16.msra.mxu0 0
    %128 = vmatpush.bf16.msra.mxu0 0
    %129 = vmatpush.bf16.msra.mxu0 0
    %130 = vmatpush.bf16.msra.mxu0 0
    %131 = vmatpush.bf16.msra.mxu0 %v104
    %132 = vmatpush.bf16.msra.mxu0 %v87
    %133 = vmatmul.bf16.gmra.mxu0 %v94
    %v134 = vpop.f32.mrf.mxu0
    %v135 = vadd.f32 %v47, %v134
    %v136 = vpop.f32.mrf.mxu0
    %v137 = vadd.f32 %v52, %v136
    %138 = vmatmul.bf16.gmra.mxu0 %v97
    %v139 = vpop.f32.mrf.mxu0
    %v140 = vadd.f32 %v57, %v139
    %v141 = vpop.f32.mrf.mxu0
    %v142 = vadd.f32 %v62, %v141
    %143 = vdwg.mxu0
    %v144 = vmax.f32 %v116, 0.0
    %v145 = vmax.f32 %v135, 0.0
    %v146 = vmax.f32 %v118, 0.0
    %v147 = vmax.f32 %v137, 0.0
    %v148 = vmax.f32 %v121, 0.0
    %v149 = vmax.f32 %v140, 0.0
    %v150 = vmax.f32 %v123, 0.0
    %v151 = vmax.f32 %v142, 0.0
    %v152 = vld [vmem:[%s3] sm:$0xf]
    %v153 = vld [vmem:[%s3 + $0x4] sm:$0xf]
    %v154 = vpack.c.bf16 %v146, %v144
    %v155 = vpack.c.bf16 %v147, %v145
    %v156 = vpack.c.bf16 %v150, %v148
    %v157 = vpack.c.bf16 %v151, %v149
    %v158 = vld [vmem:[%s4] sm:$0xff]
    %v159 = vld [vmem:[%s4 + $0x8] sm:$0xff]
    %161 = vset.pattern.permute.xlu0 0
    %162 = vperm.xlu0 %161, %v158
    %v163 = vpop.permute.xlu0 %162
    %166 = vset.pattern.permute.xlu0 0
    %167 = vperm.xlu0 %166, %v159
    %v168 = vpop.permute.xlu0 %167
    %v172 = vunpack.c.l.b16 %v152
    %v173 = vunpack.c.l.b16 %v153
    %v174 = vpack.c.b16 %v173, %v172
    %vm175 = vcmask 261120
    %v177 = vsel %vm175, %v174, 0
    %179 = vmatpush.bf16.msra.mxu0 0
    %180 = vmatpush.bf16.msra.mxu0 0
    %181 = vmatpush.bf16.msra.mxu0 0
    %182 = vmatpush.bf16.msra.mxu0 0
    %183 = vmatpush.bf16.msra.mxu0 0
    %184 = vmatpush.bf16.msra.mxu0 0
    %185 = vmatpush.bf16.msra.mxu0 %v156
    %186 = vmatpush.bf16.msra.mxu0 %v154
    %187 = vmatmul.bf16.gmra.mxu0 %v177
    %v188 = vpop.f32.mrf.mxu0
    %v189 = vadd.f32 %v163, %v188
    %v190 = vpop.f32.mrf.mxu0
    %v191 = vadd.f32 %v168, %v190
    %192 = vdwg.mxu0
    %193 = vmatpush.bf16.msra.mxu0 0
    %194 = vmatpush.bf16.msra.mxu0 0
    %195 = vmatpush.bf16.msra.mxu0 0
    %196 = vmatpush.bf16.msra.mxu0 0
    %197 = vmatpush.bf16.msra.mxu0 0
    %198 = vmatpush.bf16.msra.mxu0 0
    %199 = vmatpush.bf16.msra.mxu0 %v157
    %200 = vmatpush.bf16.msra.mxu0 %v155
    %201 = vmatmul.bf16.gmra.mxu0 %v177
    %v202 = vpop.f32.mrf.mxu0
    %v203 = vadd.f32 %v163, %v202
    %v204 = vpop.f32.mrf.mxu0
    %v205 = vadd.f32 %v168, %v204
    %206 = vdwg.mxu0
    %v207 = vmax.f32 %v189, 0.0
    %v208 = vmax.f32 %v203, 0.0
    %v209 = vmax.f32 %v191, 0.0
    %v210 = vmax.f32 %v205, 0.0
    %v211 = vld [vmem:[%s5] sm:$0xff]
    %v212 = vld [vmem:[%s5 + $0x8] sm:$0xff]
    %214 = vset.pattern.permute.xlu0 0
    %215 = vperm.xlu0 %214, %v211
    %v216 = vpop.permute.xlu0 %215
    %219 = vset.pattern.permute.xlu0 0
    %220 = vperm.xlu0 %219, %v212
    %v221 = vpop.permute.xlu0 %220
    %v223 = vmul.f32 %v207, %v216
    %v224 = vmul.f32 %v208, %v216
    %v225 = vmul.f32 %v209, %v221
    %v226 = vmul.f32 %v210, %v221
    %v227 = vadd.f32 %v223, %v225
    %v228 = vrot.slane %v227, 4
    %v229 = vadd.f32 %v227, %v228
    %v230 = vrot.slane %v229, 2
    %v231 = vadd.f32 %v229, %v230
    %v232 = vrot.slane %v231, 1
    %v233 = vadd.f32 %v231, %v232
    %v234 = vadd.f32 %v224, %v226
    %v235 = vrot.slane %v234, 4
    %v236 = vadd.f32 %v234, %v235
    %v237 = vrot.slane %v236, 2
    %v238 = vadd.f32 %v236, %v237
    %v239 = vrot.slane %v238, 1
    %v240 = vadd.f32 %v238, %v239
    %v241 = vunpack.c.l.bf16 %v35
    %v242 = vunpack.c.h.bf16 %v35
    %v243 = vld [vmem:[%s6] sm:$0xf]
    %245 = vset.pattern.permute.xlu0 0
    %246 = vperm.xlu0 %245, %v243
    %v247 = vpop.permute.xlu0 %246
    %v249 = vmul.f32 %v241, %v247
    %v250 = vmul.f32 %v242, %v247
    %vm251 = vcmask 1043456
    %v252 = vsel %vm251, %v249, 0.0
    %v253 = vrot.slane %v252, 4
    %v254 = vadd.f32 %v252, %v253
    %v255 = vrot.slane %v254, 2
    %v256 = vadd.f32 %v254, %v255
    %v257 = vrot.slane %v256, 1
    %v258 = vadd.f32 %v256, %v257
    %v259 = vsel %vm251, %v250, 0.0
    %v260 = vrot.slane %v259, 4
    %v261 = vadd.f32 %v259, %v260
    %v262 = vrot.slane %v261, 2
    %v263 = vadd.f32 %v261, %v262
    %v264 = vrot.slane %v263, 1
    %v265 = vadd.f32 %v263, %v264
    %v266 = vadd.f32 %v233, %v258
    %v267 = vadd.f32 %v240, %v265
    %s268 = sld [smem:[#allocation2]]
    %v269 = vstv %s268
    %v270 = vadd.f32 %v266, %v269
    %v271 = vadd.f32 %v267, %v269
    %v272 = vsub.f32 0.0, %v270
    %v273 = vsub.f32 0.0, %v271
    %v274 = vmul.f32 %v272, 1.442695
    %v275 = vpow.pop %v274
    %v276 = vmul.f32 %v273, 1.442695
    %v277 = vpow.pop %v276
    %v278 = vadd.f32 %v275, 1.0
    %v279 = vadd.f32 %v277, 1.0
    %v280 = vrcp.pop %v278
    %v281 = vrcp.pop %v279
    %v284 = vrot.slane %v281, 7
    %vm285 = vcmask 1040384
    %v286 = vsel %vm285, %v280, %v284
    %v288 = vlaneseq
    %vm289 = vcmp.ge.s32.totalorder %v288, 0
    %vm290 = vcmp.lt.s32.totalorder %v288, 256
    %vm291 = vmand %vm289, %vm290
    %292 = vst.msk [vmem:[#allocation3] sm:$0x3] %vm291, %v286
    // Predicated region
    $region34: #{tpu_custom_call.1} parent=1 // pred_check
      _
    $region35: #{tpu_custom_call.1} parent=1 // pred_check_branch
      %294 = sbr.rel (0) target = $region37
    $region36: #{tpu_custom_call.1} parent=1 // pred_region
      %296 = vsyncadd [#allocation4], 0
      %s298 = sshll.u32 [#allocation3], 4
      %s299 = int_to_ptr.vmem [resolvable:$true] %s298
      %s300 = sshll.u32 %s8, 4
      %s301 = int_to_ptr.hbm [resolvable:$true] %s300
      %303 = dma.vmem_to_hbm [thread:$0]  %s299, 32, %s301, [#allocation4]
    $region37: #{tpu_custom_call.1} parent=1 // pred_fallthru
      _
    // Predicated region
    $region38: #{tpu_custom_call.1} parent=1 // pred_check
      _
    $region39: #{tpu_custom_call.1} parent=1 // pred_check_branch
      %305 = sbr.rel (0) target = $region41
    $region40: #{tpu_custom_call.1} parent=1 // pred_region
      %307 = dma.done [#allocation4], 32
    $region41: #{tpu_custom_call.1} parent=1 // pred_fallthru
      _
    %308 = vsyncpa [#allocation4], 1

</llo_original>
